<compile_context>
chip_gen: v6e
topology: v6e:2x2x1
jax: 0.10.0
libtpu: 0.0.40
codegen_flags: <defaults>
</compile_context>

<pallas_src>
import jax
import jax.numpy as jnp
from jax.experimental import pallas as pl
from jax.experimental.pallas import tpu as pltpu

SMOOTH_NR = 1e-5
SMOOTH_DR = 1e-5

_LANE = 128
_TK_CAP = 4096                     # keep unrolled per-lane accumulation small
_INPUT_VMEM_BUDGET = 12 * 1024 * 1024   # double-buffered input blocks budget
_VMEM_LIMIT = 32 * 1024 * 1024          # explicit scoped VMEM limit (fits v5e/v6e/v7x)
_PAD_LOGIT = -1.0e4                # sigmoid(-1e4) == 0 in f32/bf16


def _dice_kernel(p_ref, t_ref, f_ref, inter_sc, den_sc):
    k = pl.program_id(1)

    @pl.when(k == 0)
    def _():
        inter_sc[...] = jnp.zeros_like(inter_sc)
        den_sc[...] = jnp.zeros_like(den_sc)

    p = jax.nn.sigmoid(p_ref[...].astype(jnp.float32))
    t = t_ref[...].astype(jnp.float32)

    prod = p * t          # intersection contributions
    psum = p + t          # fused pred_o + gt_o contributions

    # Deferred reduction: fold tk lanes into 128 per-lane partial sums with
    # static, lane-aligned slices (pure VPU adds; no per-step XLU tree).
    nchunks = prod.shape[-1] // _LANE
    acc_i = inter_sc[...]
    acc_d = den_sc[...]
    for c in range(nchunks):
        lo = c * _LANE
        acc_i = acc_i + prod[:, lo:lo + _LANE]
        acc_d = acc_d + psum[:, lo:lo + _LANE]
    inter_sc[...] = acc_i
    den_sc[...] = acc_d

    @pl.when(k == pl.num_programs(1) - 1)
    def _():
        inter = jnp.sum(inter_sc[...], axis=-1, keepdims=True)   # (rb, 1)
        den = jnp.sum(den_sc[...], axis=-1, keepdims=True)       # (rb, 1)
        f_ref[...] = 1.0 - (2.0 * inter + SMOOTH_NR) / (den + SMOOTH_DR)


@jax.jit
def dice_loss(predicted, target):
    N, C = predicted.shape[0], predicted.shape[1]
    R = N * C
    S = 1
    for d in predicted.shape[2:]:
        S *= d

    p_bytes = jnp.dtype(predicted.dtype).itemsize
    t_bytes = jnp.dtype(target.dtype).itemsize

    # Row blocking: 2 blocks when divisible (feeds both v7x TensorCores),
    # otherwise one full-extent block (always legal per the (8,128) rule).
    nrb = 2 if (R % 16 == 0) else 1
    rb = R // nrb

    # Lane tile: largest multiple of 128 under the VMEM budget, capped.
    per_lane_bytes = 2 * rb * (p_bytes + t_bytes)        # 2 pipeline buffers
    tk_budget = max(_LANE, (_INPUT_VMEM_BUDGET // per_lane_bytes) // _LANE * _LANE)
    s_pad128 = ((S + _LANE - 1) // _LANE) * _LANE
    tk = min(_TK_CAP, tk_budget, s_pad128)

    # Pad spatial axis up to a multiple of tk (logits -> sigmoid==0, target -> 0).
    Sp = ((S + tk - 1) // tk) * tk
    nk = Sp // tk

    p2 = predicted.reshape(R, S)
    t2 = target.reshape(R, S)
    if Sp != S:
        pad = Sp - S
        p2 = jnp.pad(p2, ((0, 0), (0, pad)), constant_values=_PAD_LOGIT)
        t2 = jnp.pad(t2, ((0, 0), (0, pad)), constant_values=0)

    cost = pl.CostEstimate(
        flops=4 * R * Sp,                 # mul + add-accums per element
        transcendentals=R * Sp,           # sigmoid
        bytes_accessed=R * Sp * (p_bytes + t_bytes) + R * 4,
    )

    per_row_dice = pl.pallas_call(
        _dice_kernel,
        out_shape=jax.ShapeDtypeStruct((R, 1), jnp.float32),
        grid_spec=pltpu.PrefetchScalarGridSpec(
            num_scalar_prefetch=0,
            grid=(nrb, nk),
            in_specs=[
                pl.BlockSpec((rb, tk), lambda i, k: (i, k)),
                pl.BlockSpec((rb, tk), lambda i, k: (i, k)),
            ],
            out_specs=pl.BlockSpec((rb, 1), lambda i, k: (i, 0)),
            scratch_shapes=[
                pltpu.VMEM((rb, _LANE), jnp.float32),   # per-lane intersection
                pltpu.VMEM((rb, _LANE), jnp.float32),   # per-lane (pred + target)
            ],
        ),
        compiler_params=pltpu.CompilerParams(
            dimension_semantics=("parallel", "arbitrary"),
            vmem_limit_bytes=_VMEM_LIMIT,
        ),
        cost_estimate=cost,
    )(p2, t2)

    return jnp.mean(per_row_dice)        # reduction="mean" over N*C


def _dice_loss_ref(predicted, target):
    p = jax.nn.sigmoid(predicted.astype(jnp.float32))
    t = target.astype(jnp.float32)
    axes = tuple(range(2, predicted.ndim))
    inter = jnp.sum(p * t, axis=axes)
    pred_o = jnp.sum(p, axis=axes)
    gt_o = jnp.sum(t, axis=axes)
    f = 1.0 - (2.0 * inter + SMOOTH_NR) / (gt_o + pred_o + SMOOTH_DR)
    return jnp.mean(f)


if __name__ == "__main__":
    key = jax.random.PRNGKey(0)
    kp, kt = jax.random.split(key)

    # Small shapes consistent with the module: NCHW logits + same-shape target.
    x = jax.random.normal(kp, (2, 4, 16, 16), dtype=jnp.float32)
    y = (jax.random.uniform(kt, (2, 4, 16, 16)) > 0.5).astype(jnp.float32)

    loss = dice_loss(x, y)
    jax.block_until_ready(loss)

    ref = _dice_loss_ref(x, y)
    assert jnp.allclose(loss, ref, atol=1e-5, rtol=1e-5), (loss, ref)

    print("KERNEL_OK")
</pallas_src>

<mosaic_0001>
module attributes {stable_mosaic.version = 11 : i64} {
  func.func @_dice_kernel(%arg0: i32, %arg1: i32, %arg2: memref<8x256xf32, #tpu.memory_space<vmem>>, %arg3: memref<8x256xf32, #tpu.memory_space<vmem>>, %arg4: memref<8x1xf32, #tpu.memory_space<vmem>>, %arg5: memref<8x128xf32, #tpu.memory_space<vmem>>, %arg6: memref<8x128xf32, #tpu.memory_space<vmem>>) attributes {dimension_semantics = [#tpu.dimension_semantics<parallel>, #tpu.dimension_semantics<arbitrary>], iteration_bounds = array<i64: 1, 1>, scalar_prefetch = 0 : i64, scratch_operands = 2 : i64, tpu.core_type = #tpu.core_type<tc>, window_params = [{transform_indices = @transform_0, window_bounds = array<i64: 8, 256>}, {transform_indices = @transform_1, window_bounds = array<i64: 8, 256>}, {transform_indices = @transform_2, window_bounds = array<i64: 8, 1>}]} {
    %c0_i32 = arith.constant 0 : i32
    %0 = arith.cmpi eq, %arg1, %c0_i32 : i32
    %1 = arith.extui %0 : i1 to i32
    %c0_i32_0 = arith.constant 0 : i32
    %2 = arith.cmpi ne, %1, %c0_i32_0 : i32
    scf.if %2 {
      %cst_14 = arith.constant 0.000000e+00 : f32
      %27 = vector.broadcast %cst_14 : f32 to vector<8x128xf32>
      %c0_15 = arith.constant 0 : index
      %c0_16 = arith.constant 0 : index
      %28 = vector.load %arg5[%c0_15, %c0_16] : memref<8x128xf32, #tpu.memory_space<vmem>>, vector<8x128xf32>
      tpu.vector_store %arg5[%c0_15, %c0_16], %27 {strides = array<i32>} : memref<8x128xf32, #tpu.memory_space<vmem>>, vector<8x128xf32>,
      %cst_17 = arith.constant 0.000000e+00 : f32
      %29 = vector.broadcast %cst_17 : f32 to vector<8x128xf32>
      %c0_18 = arith.constant 0 : index
      %c0_19 = arith.constant 0 : index
      %30 = vector.load %arg6[%c0_18, %c0_19] : memref<8x128xf32, #tpu.memory_space<vmem>>, vector<8x128xf32>
      tpu.vector_store %arg6[%c0_18, %c0_19], %29 {strides = array<i32>} : memref<8x128xf32, #tpu.memory_space<vmem>>, vector<8x128xf32>,
    } else {
    }
    %c0 = arith.constant 0 : index
    %c0_1 = arith.constant 0 : index
    %3 = vector.load %arg2[%c0, %c0_1] : memref<8x256xf32, #tpu.memory_space<vmem>>, vector<8x256xf32>
    %4 = arith.negf %3 : vector<8x256xf32>
    %5 = math.exp %4 : vector<8x256xf32>
    %cst = arith.constant 1.000000e+00 : f32
    %6 = vector.broadcast %cst : f32 to vector<8x256xf32>
    %7 = arith.addf %6, %5 : vector<8x256xf32>
    %8 = arith.divf %6, %7 : vector<8x256xf32>
    %c0_2 = arith.constant 0 : index
    %c0_3 = arith.constant 0 : index
    %9 = vector.load %arg3[%c0_2, %c0_3] : memref<8x256xf32, #tpu.memory_space<vmem>>, vector<8x256xf32>
    %10 = arith.mulf %8, %9 : vector<8x256xf32>
    %11 = arith.addf %8, %9 : vector<8x256xf32>
    %c0_4 = arith.constant 0 : index
    %c0_5 = arith.constant 0 : index
    %12 = vector.load %arg5[%c0_4, %c0_5] : memref<8x128xf32, #tpu.memory_space<vmem>>, vector<8x128xf32>
    %c0_6 = arith.constant 0 : index
    %c0_7 = arith.constant 0 : index
    %13 = vector.load %arg6[%c0_6, %c0_7] : memref<8x128xf32, #tpu.memory_space<vmem>>, vector<8x128xf32>
    %14 = vector.extract_strided_slice %10 {offsets = [0, 0], sizes = [8, 128], strides = [1, 1]} : vector<8x256xf32> to vector<8x128xf32>
    %15 = arith.addf %12, %14 : vector<8x128xf32>
    %16 = vector.extract_strided_slice %11 {offsets = [0, 0], sizes = [8, 128], strides = [1, 1]} : vector<8x256xf32> to vector<8x128xf32>
    %17 = arith.addf %13, %16 : vector<8x128xf32>
    %18 = vector.extract_strided_slice %10 {offsets = [0, 128], sizes = [8, 128], strides = [1, 1]} : vector<8x256xf32> to vector<8x128xf32>
    %19 = arith.addf %15, %18 : vector<8x128xf32>
    %20 = vector.extract_strided_slice %11 {offsets = [0, 128], sizes = [8, 128], strides = [1, 1]} : vector<8x256xf32> to vector<8x128xf32>
    %21 = arith.addf %17, %20 : vector<8x128xf32>
    %c0_8 = arith.constant 0 : index
    %c0_9 = arith.constant 0 : index
    %22 = vector.load %arg5[%c0_8, %c0_9] : memref<8x128xf32, #tpu.memory_space<vmem>>, vector<8x128xf32>
    tpu.vector_store %arg5[%c0_8, %c0_9], %19 {strides = array<i32>} : memref<8x128xf32, #tpu.memory_space<vmem>>, vector<8x128xf32>,
    %c0_10 = arith.constant 0 : index
    %c0_11 = arith.constant 0 : index
    %23 = vector.load %arg6[%c0_10, %c0_11] : memref<8x128xf32, #tpu.memory_space<vmem>>, vector<8x128xf32>
    tpu.vector_store %arg6[%c0_10, %c0_11], %21 {strides = array<i32>} : memref<8x128xf32, #tpu.memory_space<vmem>>, vector<8x128xf32>,
    %c0_i32_12 = arith.constant 0 : i32
    %24 = arith.cmpi eq, %arg1, %c0_i32_12 : i32
    %25 = arith.extui %24 : i1 to i32
    %c0_i32_13 = arith.constant 0 : i32
    %26 = arith.cmpi ne, %25, %c0_i32_13 : i32
    scf.if %26 {
      %c0_14 = arith.constant 0 : index
      %c0_15 = arith.constant 0 : index
      %27 = vector.load %arg5[%c0_14, %c0_15] : memref<8x128xf32, #tpu.memory_space<vmem>>, vector<8x128xf32>
      %cst_16 = arith.constant dense<0.000000e+00> : vector<8xf32>
      %28 = vector.multi_reduction <add>, %27, %cst_16 [1] : vector<8x128xf32> to vector<8xf32>
      %29 = vector.shape_cast %28 : vector<8xf32> to vector<8x1xf32>
      %c0_17 = arith.constant 0 : index
      %c0_18 = arith.constant 0 : index
      %30 = vector.load %arg6[%c0_17, %c0_18] : memref<8x128xf32, #tpu.memory_space<vmem>>, vector<8x128xf32>
      %cst_19 = arith.constant dense<0.000000e+00> : vector<8xf32>
      %31 = vector.multi_reduction <add>, %30, %cst_19 [1] : vector<8x128xf32> to vector<8xf32>
      %32 = vector.shape_cast %31 : vector<8xf32> to vector<8x1xf32>
      %cst_20 = arith.constant 2.000000e+00 : f32
      %33 = vector.broadcast %cst_20 : f32 to vector<8x1xf32>
      %34 = arith.mulf %33, %29 : vector<8x1xf32>
      %cst_21 = arith.constant 9.99999974E-6 : f32
      %35 = vector.broadcast %cst_21 : f32 to vector<8x1xf32>
      %36 = arith.addf %34, %35 : vector<8x1xf32>
      %cst_22 = arith.constant 9.99999974E-6 : f32
      %37 = vector.broadcast %cst_22 : f32 to vector<8x1xf32>
      %38 = arith.addf %32, %37 : vector<8x1xf32>
      %39 = arith.divf %36, %38 : vector<8x1xf32>
      %cst_23 = arith.constant 1.000000e+00 : f32
      %40 = vector.broadcast %cst_23 : f32 to vector<8x1xf32>
      %41 = arith.subf %40, %39 : vector<8x1xf32>
      %c0_24 = arith.constant 0 : index
      %c0_25 = arith.constant 0 : index
      %42 = vector.load %arg4[%c0_24, %c0_25] : memref<8x1xf32, #tpu.memory_space<vmem>>, vector<8x1xf32>
      tpu.vector_store %arg4[%c0_24, %c0_25], %41 {strides = array<i32>} : memref<8x1xf32, #tpu.memory_space<vmem>>, vector<8x1xf32>,
    } else {
    }
    return
  }
  func.func @transform_0(%arg0: i32, %arg1: i32) -> (i32, i32) {
    %c0_i32 = arith.constant 0 : i32
    return %arg0, %arg1 : i32, i32
  }
  func.func @transform_1(%arg0: i32, %arg1: i32) -> (i32, i32) {
    %c0_i32 = arith.constant 0 : i32
    return %arg0, %arg1 : i32, i32
  }
  func.func @transform_2(%arg0: i32, %arg1: i32) -> (i32, i32) {
    %c0_i32 = arith.constant 0 : i32
    %c0_i32_0 = arith.constant 0 : i32
    return %arg0, %c0_i32 : i32, i32
  }
}

</mosaic_0001>

<llo_original>
// kernel: dice_loss.1
$region0: #{dice_loss.1}
  #allocation0 [shape = 'u32[]', space=smem, size = 0x4, offset = 0x4, fixed_abs, tag = 'smem constant byte address 0x4 - core index']
  #allocation1 [shape = 'u32[144,128]{1,0:T(1,128)}', space=vmem, size = 0x12000, scoped, tag = 'internal scratch']
  #allocation2 [shape = 'f32[8,128]{1,0:T(8,128)}', space=vmem, size = 0x1000, scoped, tag = 'scratch operand']
  #allocation3 [shape = 'f32[8,128]{1,0:T(8,128)}', space=vmem, size = 0x1000, scoped, tag = 'scratch operand']
  %s0 = inlined_call_operand.vmem [shape: f32[8,256], index: 0, kind: input, shape index: {}]
  %s1 = inlined_call_operand.vmem [shape: f32[8,256], index: 1, kind: input, shape index: {}]
  %s2 = inlined_call_operand.vmem [shape: f32[8,1], index: 2, kind: output, shape index: {}]
  %s3 = sld [smem:[#allocation0]]
  $region26: #{dice_loss.1} parent=0
    _
  %s5 = ssub.s32 1, %s3
  %s6 = scalar_select 0, %s5, %s3
  // Predicated region
  $region2: #{dice_loss.1} parent=0 // pred_check
    _
  $region3: #{dice_loss.1} parent=0 // pred_check_branch
    %8 = sbr.rel (0) target = $region5
  $region4: #{dice_loss.1} parent=0 // pred_region
    _
  $region5: #{dice_loss.1} parent=0 // pred_fallthru
    _
  // Predicated region
  $region6: #{dice_loss.1} parent=0 // pred_check
    _
  $region7: #{dice_loss.1} parent=0 // pred_check_branch
    %10 = sbr.rel (0) target = $region9
  $region8: #{dice_loss.1} parent=0 // pred_region
    _
  $region9: #{dice_loss.1} parent=0 // pred_fallthru
    _
  %p11 = scmp.eq.s32.totalorder 0, 0
  // Predicated region
  $region10: #{dice_loss.1} parent=0 // pred_check
    %p12 = pneg %p11
  $region11: #{dice_loss.1} parent=0 // pred_check_branch
    %14 = sbr.rel (%p12) target = $region13
  $region12: #{dice_loss.1} parent=0 // pred_region
    %15 = vst [vmem:[#allocation2] sm:$0xff] 0.0
    %16 = vst [vmem:[#allocation3] sm:$0xff] 0.0
  $region13: #{dice_loss.1} parent=0 // pred_fallthru
    _
  %v17 = vld [vmem:[%s0] sm:$0xff]
  %v18 = vld [vmem:[%s0 + $0x8] sm:$0xff]
  %v19 = vxor.u32 %v17, 2147483648
  %v20 = vxor.u32 %v18, 2147483648
  %v21 = vmul.f32 %v19, 1.442695
  %v22 = vpow.pop %v21
  %v23 = vmul.f32 %v20, 1.442695
  %v24 = vpow.pop %v23
  %v25 = vadd.f32 %v22, 1.0
  %v26 = vadd.f32 %v24, 1.0
  %v27 = vrcp.pop %v25
  %v28 = vmul.f32 1.0, %v27
  %v29 = vrcp.pop %v26
  %v30 = vmul.f32 1.0, %v29
  %v31 = vld [vmem:[%s1] sm:$0xff]
  %v32 = vld [vmem:[%s1 + $0x8] sm:$0xff]
  %v33 = vmul.f32 %v28, %v31
  %v34 = vmul.f32 %v30, %v32
  %v35 = vadd.f32 %v28, %v31
  %v36 = vadd.f32 %v30, %v32
  %v37 = vld [vmem:[#allocation2] sm:$0xff]
  %v38 = vld [vmem:[#allocation3] sm:$0xff]
  %v39 = vadd.f32 %v37, %v33
  %v40 = vadd.f32 %v38, %v35
  %v41 = vadd.f32 %v39, %v34
  %v42 = vadd.f32 %v40, %v36
  %43 = vst [vmem:[#allocation2] sm:$0xff] %v41
  %44 = vst [vmem:[#allocation3] sm:$0xff] %v42
  // Predicated region
  $region14: #{dice_loss.1} parent=0 // pred_check
    %p45 = pneg %p11
  $region15: #{dice_loss.1} parent=0 // pred_check_branch
    %47 = sbr.rel (%p45) target = $region17
  $region16: #{dice_loss.1} parent=0 // pred_region
    %v48 = vld [vmem:[#allocation2] sm:$0xff]
    %49 = vadd.xlane.f32.xlu0 %v48
    %v50 = vpop.xlane.xlu0 %49
    %v51 = vld [vmem:[#allocation3] sm:$0xff]
    %52 = vadd.xlane.f32.xlu0 %v51
    %v53 = vpop.xlane.xlu0 %52
    %v54 = vmul.f32 %v50, 2.0
    %v55 = vadd.f32 %v54, 1e-05
    %v56 = vadd.f32 %v53, 1e-05
    %v57 = vrcp.pop %v56
    %v58 = vmul.f32 %v55, %v57
    %v59 = vsub.f32 1.0, %v58
    %vm60 = vcmask 7168
    %61 = vst.msk [vmem:[%s2] sm:$0xff] %vm60, %v59
  $region17: #{dice_loss.1} parent=0 // pred_fallthru
    _
  // Predicated region
  $region18: #{dice_loss.1} parent=0 // pred_check
    _
  $region19: #{dice_loss.1} parent=0 // pred_check_branch
    %63 = sbr.rel (0) target = $region21
  $region20: #{dice_loss.1} parent=0 // pred_region
    _
  $region21: #{dice_loss.1} parent=0 // pred_fallthru
    _
  // Predicated region
  $region22: #{dice_loss.1} parent=0 // pred_check
    _
  $region23: #{dice_loss.1} parent=0 // pred_check_branch
    %65 = sbr.rel (0) target = $region25
  $region24: #{dice_loss.1} parent=0 // pred_region
    _
  $region25: #{dice_loss.1} parent=0 // pred_fallthru
    _

</llo_original>
